<compile_context>
chip_gen: v6e
topology: v6e:2x2x1
jax: 0.10.0
libtpu: 0.0.40
codegen_flags: <defaults>
</compile_context>

<pallas_src>
import math

import jax
import jax.numpy as jnp
from jax.experimental import pallas as pl
from jax.experimental.pallas import tpu as pltpu

B, S, H, VOCAB = 2, 8, 32, 128
LN_EPS = 1e-12
PIVOT_PAD = 128          # lane-dense width for the 2-class pivot head output


def _gelu_exact(x):
    # BERT gelu (erf form), matches torch.nn.functional.gelu default
    return 0.5 * x * (1.0 + jax.lax.erf(x * (1.0 / math.sqrt(2.0))))


def fused_heads_kernel(x_ref, m_ref, wt_ref, bt_ref, g_ref, b_ref,
                       wd_ref, bd_ref, wp_ref, bp_ref,
                       lm_ref, piv_ref, h_scratch):
    j = pl.program_id(0)                               # vocab tile index
    Bb, Ss, Hh = x_ref.shape
    Mm = Bb * Ss

    # ---- Step 0 only: transform -> gelu -> LayerNorm (cached), pivot head ----
    @pl.when(j == 0)
    def _():
        x3 = x_ref[...]                                # [B, S, H]
        x = x3.reshape(Mm, Hh)                         # [M, H] (lane dim preserved)

        # BertLMPredictionHead transform
        h = jnp.dot(x, wt_ref[...], preferred_element_type=jnp.float32) + bt_ref[...]
        h = _gelu_exact(h)
        mu = jnp.mean(h, axis=-1, keepdims=True)
        var = jnp.mean(jnp.square(h - mu), axis=-1, keepdims=True)
        h = (h - mu) * jax.lax.rsqrt(var + LN_EPS)
        h_scratch[...] = h * g_ref[...] + b_ref[...]

        # BertPivotTreatPredictionHead: GradReverse (identity fwd) ->
        # masked avg pooling over seq -> Linear(H, 2) (padded to 128 lanes)
        m = m_ref[...].astype(jnp.float32)             # [B, S]
        lengths = jnp.sum(m, axis=-1, keepdims=True)   # [B, 1]
        inv_len = 1.0 / jnp.maximum(lengths, 1.0)      # guard all-zero mask rows
        pooled = jnp.sum(x3 * m[:, :, None], axis=1) * inv_len      # [B, H]
        piv_ref[...] = jnp.dot(pooled, wp_ref[...],
                               preferred_element_type=jnp.float32) + bp_ref[...]

    # ---- Every step: decoder matmul over this vocab tile (+bias) ----
    tn = lm_ref.shape[-1]
    lm = jnp.dot(h_scratch[...], wd_ref[...],
                 preferred_element_type=jnp.float32) + bd_ref[...]
    lm_ref[...] = lm.reshape(Bb, Ss, tn)


def _pick_vocab_tile(V):
    # Largest lane-aligned tile that divides V; falls back to the full vocab.
    for tn in (2048, 1024, 512, 256, 128):
        if V % tn == 0:
            return tn
    return V


def bert_pivot_treat_pretraining_heads(sequence_output, sequence_mask, params):
    Bb, Ss, Hh = sequence_output.shape
    M = Bb * Ss
    V = params["w_decoder"].shape[1]                   # vocab from the weights
    tn = _pick_vocab_tile(V)
    nv = V // tn
    P = PIVOT_PAD

    # Lane-dense padding of the tiny pivot head (2 -> 128 output columns).
    # At real scale this would be done once at parameter-init time.
    f32 = jnp.float32
    w_pivot_p = jnp.zeros((Hh, P), f32).at[:, :2].set(params["w_pivot"])
    b_pivot_p = jnp.zeros((1, P), f32).at[:, :2].set(params["b_pivot"])

    # Advisory cost hint for XLA's scheduler around the custom call.
    flops = (2 * M * Hh * Hh            # transform matmul
             + 2 * M * Hh * V           # decoder matmul
             + 12 * M * Hh              # gelu + LayerNorm elementwise
             + 2 * Bb * Ss * Hh         # masked pooling
             + 2 * Bb * Hh * P)         # pivot decoder
    bytes_accessed = 4 * (sequence_output.size + sequence_mask.size
                          + Hh * Hh + 3 * Hh + Hh * V + V + Hh * P + P
                          + M * V + Bb * P)
    cost = pl.CostEstimate(flops=flops, transcendentals=M * Hh,
                           bytes_accessed=bytes_accessed)

    lm_scores, piv_padded = pl.pallas_call(
        fused_heads_kernel,
        out_shape=(jax.ShapeDtypeStruct((Bb, Ss, V), jnp.float32),
                   jax.ShapeDtypeStruct((Bb, P), jnp.float32)),
        grid_spec=pltpu.PrefetchScalarGridSpec(
            num_scalar_prefetch=0,
            grid=(nv,),
            in_specs=[
                pl.BlockSpec((Bb, Ss, Hh), lambda j: (0, 0, 0)),  # sequence_output
                pl.BlockSpec((Bb, Ss), lambda j: (0, 0)),         # sequence_mask
                pl.BlockSpec((Hh, Hh), lambda j: (0, 0)),         # transform weight (in, out)
                pl.BlockSpec((1, Hh), lambda j: (0, 0)),          # transform bias
                pl.BlockSpec((1, Hh), lambda j: (0, 0)),          # LN gamma
                pl.BlockSpec((1, Hh), lambda j: (0, 0)),          # LN beta
                pl.BlockSpec((Hh, tn), lambda j: (0, j)),         # decoder weight tile
                pl.BlockSpec((1, tn), lambda j: (0, j)),          # decoder bias tile
                pl.BlockSpec((Hh, P), lambda j: (0, 0)),          # pivot decoder weight (padded)
                pl.BlockSpec((1, P), lambda j: (0, 0)),           # pivot decoder bias (padded)
            ],
            out_specs=(pl.BlockSpec((Bb, Ss, tn), lambda j: (0, 0, j)),
                       pl.BlockSpec((Bb, P), lambda j: (0, 0))),
            scratch_shapes=[pltpu.VMEM((M, Hh), jnp.float32)],    # cached transform+LN output
        ),
        compiler_params=pltpu.CompilerParams(
            dimension_semantics=("arbitrary",)),
        cost_estimate=cost,
    )(sequence_output, sequence_mask,
      params["w_transform"], params["b_transform"],
      params["ln_gamma"], params["ln_beta"],
      params["w_decoder"], params["b_decoder"],
      w_pivot_p, b_pivot_p)

    return lm_scores, piv_padded[:, :2]


def make_params(key):
    ks = jax.random.split(key, 7)
    scale = 0.02
    return {
        # stored pre-transposed as (in, out) so kernels do x @ W
        "w_transform": scale * jax.random.normal(ks[0], (H, H), jnp.float32),
        "b_transform": scale * jax.random.normal(ks[1], (1, H), jnp.float32),
        "ln_gamma": jnp.ones((1, H), jnp.float32),
        "ln_beta": jnp.zeros((1, H), jnp.float32),
        "w_decoder": scale * jax.random.normal(ks[2], (H, VOCAB), jnp.float32),
        "b_decoder": scale * jax.random.normal(ks[3], (1, VOCAB), jnp.float32),
        "w_pivot": scale * jax.random.normal(ks[4], (H, 2), jnp.float32),
        "b_pivot": scale * jax.random.normal(ks[5], (1, 2), jnp.float32),
    }


def reference(x, mask, p):
    h = jnp.einsum("bsh,hk->bsk", x, p["w_transform"]) + p["b_transform"][0]
    h = _gelu_exact(h)
    mu = h.mean(-1, keepdims=True)
    var = ((h - mu) ** 2).mean(-1, keepdims=True)
    h = (h - mu) / jnp.sqrt(var + LN_EPS) * p["ln_gamma"][0] + p["ln_beta"][0]
    lm = jnp.einsum("bsh,hv->bsv", h, p["w_decoder"]) + p["b_decoder"][0]
    m = mask.astype(jnp.float32)
    lengths = m.sum(-1)[:, None, None]
    pooled = ((x * m[:, :, None]) / lengths).sum(axis=1)
    piv = pooled @ p["w_pivot"] + p["b_pivot"][0]
    return lm, piv


if __name__ == "__main__":
    key = jax.random.PRNGKey(0)
    k_x, k_p = jax.random.split(key)

    sequence_output = jax.random.normal(k_x, (B, S, H), jnp.float32)
    # mask: first example fully valid, second has length 5
    seq_ids = jnp.arange(S)[None, :]
    lengths = jnp.array([[S], [5]])
    sequence_mask = (seq_ids < lengths).astype(jnp.int32)            # [B, S]

    params = make_params(k_p)

    lm_scores, pivot_scores = bert_pivot_treat_pretraining_heads(
        sequence_output, sequence_mask, params)
    jax.block_until_ready((lm_scores, pivot_scores))

    lm_ref, piv_ref = reference(sequence_output, sequence_mask, params)
    assert lm_scores.shape == (B, S, VOCAB)
    assert pivot_scores.shape == (B, 2)
    assert jnp.allclose(lm_scores, lm_ref, atol=1e-4, rtol=1e-4)
    assert jnp.allclose(pivot_scores, piv_ref, atol=1e-4, rtol=1e-4)

    print("KERNEL_OK")
</pallas_src>

<mosaic_0001>
module attributes {stable_mosaic.version = 11 : i64} {
  func.func @fused_heads_kernel(%arg0: i32, %arg1: memref<2x8x32xf32, #tpu.memory_space<vmem>>, %arg2: memref<2x8xi32, #tpu.memory_space<vmem>>, %arg3: memref<32x32xf32, #tpu.memory_space<vmem>>, %arg4: memref<1x32xf32, #tpu.memory_space<vmem>>, %arg5: memref<1x32xf32, #tpu.memory_space<vmem>>, %arg6: memref<1x32xf32, #tpu.memory_space<vmem>>, %arg7: memref<32x128xf32, #tpu.memory_space<vmem>>, %arg8: memref<1x128xf32, #tpu.memory_space<vmem>>, %arg9: memref<32x128xf32, #tpu.memory_space<vmem>>, %arg10: memref<1x128xf32, #tpu.memory_space<vmem>>, %arg11: memref<2x8x128xf32, #tpu.memory_space<vmem>>, %arg12: memref<2x128xf32, #tpu.memory_space<vmem>>, %arg13: memref<16x32xf32, #tpu.memory_space<vmem>>) attributes {dimension_semantics = [#tpu.dimension_semantics<arbitrary>], iteration_bounds = array<i64: 1>, scalar_prefetch = 0 : i64, scratch_operands = 1 : i64, tpu.core_type = #tpu.core_type<tc>, window_params = [{pipeline_mode = #tpu.pipeline_mode<synchronous>, transform_indices = @transform_0, window_bounds = array<i64: 2, 8, 32>}, {pipeline_mode = #tpu.pipeline_mode<synchronous>, transform_indices = @transform_1, window_bounds = array<i64: 2, 8>}, {pipeline_mode = #tpu.pipeline_mode<synchronous>, transform_indices = @transform_2, window_bounds = array<i64: 32, 32>}, {pipeline_mode = #tpu.pipeline_mode<synchronous>, transform_indices = @transform_3, window_bounds = array<i64: 1, 32>}, {pipeline_mode = #tpu.pipeline_mode<synchronous>, transform_indices = @transform_4, window_bounds = array<i64: 1, 32>}, {pipeline_mode = #tpu.pipeline_mode<synchronous>, transform_indices = @transform_5, window_bounds = array<i64: 1, 32>}, {transform_indices = @transform_6, window_bounds = array<i64: 32, 128>}, {transform_indices = @transform_7, window_bounds = array<i64: 1, 128>}, {pipeline_mode = #tpu.pipeline_mode<synchronous>, transform_indices = @transform_8, window_bounds = array<i64: 32, 128>}, {pipeline_mode = #tpu.pipeline_mode<synchronous>, transform_indices = @transform_9, window_bounds = array<i64: 1, 128>}, {transform_indices = @transform_10, window_bounds = array<i64: 2, 8, 128>}, {pipeline_mode = #tpu.pipeline_mode<synchronous>, transform_indices = @transform_11, window_bounds = array<i64: 2, 128>}]} {
    %c0_i32 = arith.constant 0 : i32
    %0 = arith.cmpi eq, %arg0, %c0_i32 : i32
    %1 = arith.extui %0 : i1 to i32
    %c0_i32_0 = arith.constant 0 : i32
    %2 = arith.cmpi ne, %1, %c0_i32_0 : i32
    scf.if %2 {
      %c0_9 = arith.constant 0 : index
      %c0_10 = arith.constant 0 : index
      %c0_11 = arith.constant 0 : index
      %11 = vector.load %arg1[%c0_9, %c0_10, %c0_11] : memref<2x8x32xf32, #tpu.memory_space<vmem>>, vector<2x8x32xf32>
      %12 = vector.shape_cast %11 : vector<2x8x32xf32> to vector<16x32xf32>
      %c0_12 = arith.constant 0 : index
      %c0_13 = arith.constant 0 : index
      %13 = vector.load %arg3[%c0_12, %c0_13] : memref<32x32xf32, #tpu.memory_space<vmem>>, vector<32x32xf32>
      %cst_14 = arith.constant dense<0.000000e+00> : vector<16x32xf32>
      %14 = tpu.matmul %12, %13, %cst_14 {dimension_numbers = #tpu.dot_dimension_numbers<[1], [0], [0], [1], [0, 0, 1, 1], [], []>} : vector<16x32xf32>, vector<32x32xf32>, vector<16x32xf32> -> vector<16x32xf32>
      %c0_15 = arith.constant 0 : index
      %c0_16 = arith.constant 0 : index
      %15 = vector.load %arg4[%c0_15, %c0_16] : memref<1x32xf32, #tpu.memory_space<vmem>>, vector<1x32xf32>
      %16 = vector.broadcast %15 : vector<1x32xf32> to vector<16x32xf32>
      %17 = arith.addf %14, %16 : vector<16x32xf32>
      %cst_17 = arith.constant 5.000000e-01 : f32
      %18 = vector.broadcast %cst_17 : f32 to vector<16x32xf32>
      %19 = arith.mulf %18, %17 : vector<16x32xf32>
      %cst_18 = arith.constant 0.707106769 : f32
      %20 = vector.broadcast %cst_18 : f32 to vector<16x32xf32>
      %21 = arith.mulf %17, %20 : vector<16x32xf32>
      %22 = math.erf %21 : vector<16x32xf32>
      %cst_19 = arith.constant 1.000000e+00 : f32
      %23 = vector.broadcast %cst_19 : f32 to vector<16x32xf32>
      %24 = arith.addf %23, %22 : vector<16x32xf32>
      %25 = arith.mulf %19, %24 : vector<16x32xf32>
      %cst_20 = arith.constant dense<0.000000e+00> : vector<16xf32>
      %26 = vector.multi_reduction <add>, %25, %cst_20 [1] : vector<16x32xf32> to vector<16xf32>
      %27 = vector.shape_cast %26 : vector<16xf32> to vector<16x1xf32>
      %cst_21 = arith.constant 3.200000e+01 : f32
      %28 = vector.broadcast %cst_21 : f32 to vector<16x1xf32>
      %29 = arith.divf %27, %28 : vector<16x1xf32>
      %30 = vector.broadcast %29 : vector<16x1xf32> to vector<16x32xf32>
      %31 = arith.subf %25, %30 : vector<16x32xf32>
      %32 = arith.mulf %31, %31 : vector<16x32xf32>
      %cst_22 = arith.constant dense<0.000000e+00> : vector<16xf32>
      %33 = vector.multi_reduction <add>, %32, %cst_22 [1] : vector<16x32xf32> to vector<16xf32>
      %34 = vector.shape_cast %33 : vector<16xf32> to vector<16x1xf32>
      %cst_23 = arith.constant 3.200000e+01 : f32
      %35 = vector.broadcast %cst_23 : f32 to vector<16x1xf32>
      %36 = arith.divf %34, %35 : vector<16x1xf32>
      %37 = vector.broadcast %29 : vector<16x1xf32> to vector<16x32xf32>
      %38 = arith.subf %25, %37 : vector<16x32xf32>
      %cst_24 = arith.constant 9.99999996E-13 : f32
      %39 = vector.broadcast %cst_24 : f32 to vector<16x1xf32>
      %40 = arith.addf %36, %39 : vector<16x1xf32>
      %41 = math.rsqrt %40 : vector<16x1xf32>
      %42 = vector.broadcast %41 : vector<16x1xf32> to vector<16x32xf32>
      %43 = arith.mulf %38, %42 : vector<16x32xf32>
      %c0_25 = arith.constant 0 : index
      %c0_26 = arith.constant 0 : index
      %44 = vector.load %arg5[%c0_25, %c0_26] : memref<1x32xf32, #tpu.memory_space<vmem>>, vector<1x32xf32>
      %45 = vector.broadcast %44 : vector<1x32xf32> to vector<16x32xf32>
      %46 = arith.mulf %43, %45 : vector<16x32xf32>
      %c0_27 = arith.constant 0 : index
      %c0_28 = arith.constant 0 : index
      %47 = vector.load %arg6[%c0_27, %c0_28] : memref<1x32xf32, #tpu.memory_space<vmem>>, vector<1x32xf32>
      %48 = vector.broadcast %47 : vector<1x32xf32> to vector<16x32xf32>
      %49 = arith.addf %46, %48 : vector<16x32xf32>
      %c0_29 = arith.constant 0 : index
      %c0_30 = arith.constant 0 : index
      %50 = vector.load %arg13[%c0_29, %c0_30] : memref<16x32xf32, #tpu.memory_space<vmem>>, vector<16x32xf32>
      tpu.vector_store %arg13[%c0_29, %c0_30], %49 {strides = array<i32>} : memref<16x32xf32, #tpu.memory_space<vmem>>, vector<16x32xf32>,
      %c0_31 = arith.constant 0 : index
      %c0_32 = arith.constant 0 : index
      %51 = vector.load %arg2[%c0_31, %c0_32] : memref<2x8xi32, #tpu.memory_space<vmem>>, vector<2x8xi32>
      %52 = arith.sitofp %51 : vector<2x8xi32> to vector<2x8xf32>
      %cst_33 = arith.constant dense<0.000000e+00> : vector<2xf32>
      %53 = vector.multi_reduction <add>, %52, %cst_33 [1] : vector<2x8xf32> to vector<2xf32>
      %54 = vector.shape_cast %53 : vector<2xf32> to vector<2x1xf32>
      %cst_34 = arith.constant 1.000000e+00 : f32
      %55 = vector.broadcast %cst_34 : f32 to vector<2x1xf32>
      %56 = arith.maximumf %54, %55 : vector<2x1xf32>
      %cst_35 = arith.constant 1.000000e+00 : f32
      %57 = vector.broadcast %cst_35 : f32 to vector<2x1xf32>
      %58 = arith.divf %57, %56 : vector<2x1xf32>
      %59 = vector.shape_cast %52 : vector<2x8xf32> to vector<2x8x1xf32>
      %60 = vector.broadcast %59 : vector<2x8x1xf32> to vector<2x8x32xf32>
      %61 = arith.mulf %11, %60 : vector<2x8x32xf32>
      %cst_36 = arith.constant dense<0.000000e+00> : vector<2x32xf32>
      %62 = vector.multi_reduction <add>, %61, %cst_36 [1] : vector<2x8x32xf32> to vector<2x32xf32>
      %63 = vector.broadcast %58 : vector<2x1xf32> to vector<2x32xf32>
      %64 = arith.mulf %62, %63 : vector<2x32xf32>
      %c0_37 = arith.constant 0 : index
      %c0_38 = arith.constant 0 : index
      %65 = vector.load %arg9[%c0_37, %c0_38] : memref<32x128xf32, #tpu.memory_space<vmem>>, vector<32x128xf32>
      %cst_39 = arith.constant dense<0.000000e+00> : vector<2x128xf32>
      %66 = tpu.matmul %64, %65, %cst_39 {dimension_numbers = #tpu.dot_dimension_numbers<[1], [0], [0], [1], [0, 0, 1, 1], [], []>} : vector<2x32xf32>, vector<32x128xf32>, vector<2x128xf32> -> vector<2x128xf32>
      %c0_40 = arith.constant 0 : index
      %c0_41 = arith.constant 0 : index
      %67 = vector.load %arg10[%c0_40, %c0_41] : memref<1x128xf32, #tpu.memory_space<vmem>>, vector<1x128xf32>
      %68 = vector.broadcast %67 : vector<1x128xf32> to vector<2x128xf32>
      %69 = arith.addf %66, %68 : vector<2x128xf32>
      %c0_42 = arith.constant 0 : index
      %c0_43 = arith.constant 0 : index
      %70 = vector.load %arg12[%c0_42, %c0_43] : memref<2x128xf32, #tpu.memory_space<vmem>>, vector<2x128xf32>
      tpu.vector_store %arg12[%c0_42, %c0_43], %69 {strides = array<i32>} : memref<2x128xf32, #tpu.memory_space<vmem>>, vector<2x128xf32>,
    } else {
    }
    %c0 = arith.constant 0 : index
    %c0_1 = arith.constant 0 : index
    %3 = vector.load %arg13[%c0, %c0_1] : memref<16x32xf32, #tpu.memory_space<vmem>>, vector<16x32xf32>
    %c0_2 = arith.constant 0 : index
    %c0_3 = arith.constant 0 : index
    %4 = vector.load %arg7[%c0_2, %c0_3] : memref<32x128xf32, #tpu.memory_space<vmem>>, vector<32x128xf32>
    %cst = arith.constant dense<0.000000e+00> : vector<16x128xf32>
    %5 = tpu.matmul %3, %4, %cst {dimension_numbers = #tpu.dot_dimension_numbers<[1], [0], [0], [1], [0, 0, 1, 1], [], []>} : vector<16x32xf32>, vector<32x128xf32>, vector<16x128xf32> -> vector<16x128xf32>
    %c0_4 = arith.constant 0 : index
    %c0_5 = arith.constant 0 : index
    %6 = vector.load %arg8[%c0_4, %c0_5] : memref<1x128xf32, #tpu.memory_space<vmem>>, vector<1x128xf32>
    %7 = vector.broadcast %6 : vector<1x128xf32> to vector<16x128xf32>
    %8 = arith.addf %5, %7 : vector<16x128xf32>
    %9 = vector.shape_cast %8 : vector<16x128xf32> to vector<2x8x128xf32>
    %c0_6 = arith.constant 0 : index
    %c0_7 = arith.constant 0 : index
    %c0_8 = arith.constant 0 : index
    %10 = vector.load %arg11[%c0_6, %c0_7, %c0_8] : memref<2x8x128xf32, #tpu.memory_space<vmem>>, vector<2x8x128xf32>
    tpu.vector_store %arg11[%c0_6, %c0_7, %c0_8], %9 {strides = array<i32>} : memref<2x8x128xf32, #tpu.memory_space<vmem>>, vector<2x8x128xf32>,
    return
  }
  func.func @transform_0(%arg0: i32) -> (i32, i32, i32) {
    %c0_i32 = arith.constant 0 : i32
    %c0_i32_0 = arith.constant 0 : i32
    %c0_i32_1 = arith.constant 0 : i32
    %c0_i32_2 = arith.constant 0 : i32
    return %c0_i32, %c0_i32_0, %c0_i32_1 : i32, i32, i32
  }
  func.func @transform_1(%arg0: i32) -> (i32, i32) {
    %c0_i32 = arith.constant 0 : i32
    %c0_i32_0 = arith.constant 0 : i32
    %c0_i32_1 = arith.constant 0 : i32
    return %c0_i32, %c0_i32_0 : i32, i32
  }
  func.func @transform_2(%arg0: i32) -> (i32, i32) {
    %c0_i32 = arith.constant 0 : i32
    %c0_i32_0 = arith.constant 0 : i32
    %c0_i32_1 = arith.constant 0 : i32
    return %c0_i32, %c0_i32_0 : i32, i32
  }
  func.func @transform_3(%arg0: i32) -> (i32, i32) {
    %c0_i32 = arith.constant 0 : i32
    %c0_i32_0 = arith.constant 0 : i32
    %c0_i32_1 = arith.constant 0 : i32
    return %c0_i32, %c0_i32_0 : i32, i32
  }
  func.func @transform_4(%arg0: i32) -> (i32, i32) {
    %c0_i32 = arith.constant 0 : i32
    %c0_i32_0 = arith.constant 0 : i32
    %c0_i32_1 = arith.constant 0 : i32
    return %c0_i32, %c0_i32_0 : i32, i32
  }
  func.func @transform_5(%arg0: i32) -> (i32, i32) {
    %c0_i32 = arith.constant 0 : i32
    %c0_i32_0 = arith.constant 0 : i32
    %c0_i32_1 = arith.constant 0 : i32
    return %c0_i32, %c0_i32_0 : i32, i32
  }
  func.func @transform_6(%arg0: i32) -> (i32, i32) {
    %c0_i32 = arith.constant 0 : i32
    %c0_i32_0 = arith.constant 0 : i32
    return %c0_i32, %arg0 : i32, i32
  }
  func.func @transform_7(%arg0: i32) -> (i32, i32) {
    %c0_i32 = arith.constant 0 : i32
    %c0_i32_0 = arith.constant 0 : i32
    return %c0_i32, %arg0 : i32, i32
  }
  func.func @transform_8(%arg0: i32) -> (i32, i32) {
    %c0_i32 = arith.constant 0 : i32
    %c0_i32_0 = arith.constant 0 : i32
    %c0_i32_1 = arith.constant 0 : i32
    return %c0_i32, %c0_i32_0 : i32, i32
  }
  func.func @transform_9(%arg0: i32) -> (i32, i32) {
    %c0_i32 = arith.constant 0 : i32
    %c0_i32_0 = arith.constant 0 : i32
    %c0_i32_1 = arith.constant 0 : i32
    return %c0_i32, %c0_i32_0 : i32, i32
  }
  func.func @transform_10(%arg0: i32) -> (i32, i32, i32) {
    %c0_i32 = arith.constant 0 : i32
    %c0_i32_0 = arith.constant 0 : i32
    %c0_i32_1 = arith.constant 0 : i32
    return %c0_i32, %c0_i32_0, %arg0 : i32, i32, i32
  }
  func.func @transform_11(%arg0: i32) -> (i32, i32) {
    %c0_i32 = arith.constant 0 : i32
    %c0_i32_0 = arith.constant 0 : i32
    %c0_i32_1 = arith.constant 0 : i32
    return %c0_i32, %c0_i32_0 : i32, i32
  }
}

</mosaic_0001>

<llo_original>
// kernel: tpu_custom_call.1
$region0: #{tpu_custom_call.1}
  #allocation0 [shape = 'u32[]', space=smem, size = 0x4, offset = 0x4, fixed_abs, tag = 'smem constant byte address 0x4 - core index']
  #allocation1 [shape = 'u32[144,128]{1,0:T(1,128)}', space=vmem, size = 0x12000, scoped, tag = 'internal scratch']
  #allocation2 [shape = 'f32[16,32]{1,0:T(8,128)}', space=vmem, size = 0x2000, scoped, tag = 'scratch operand']
  %s0 = inlined_call_operand.hbm [shape: f32[2,8,32], index: 0, kind: input, shape index: {}]
  %s1 = inlined_call_operand.hbm [shape: s32[2,8], index: 1, kind: input, shape index: {}]
  %s2 = inlined_call_operand.hbm [shape: f32[32,32], index: 2, kind: input, shape index: {}]
  %s3 = inlined_call_operand.vmem [shape: f32[1,32], index: 3, kind: input, shape index: {}]
  %s4 = inlined_call_operand.vmem [shape: f32[1,32], index: 4, kind: input, shape index: {}]
  %s5 = inlined_call_operand.vmem [shape: f32[1,32], index: 5, kind: input, shape index: {}]
  %s6 = inlined_call_operand.hbm [shape: f32[32,128], index: 6, kind: input, shape index: {}]
  %s7 = inlined_call_operand.vmem [shape: f32[1,128], index: 7, kind: input, shape index: {}]
  %s8 = inlined_call_operand.hbm [shape: f32[32,128], index: 8, kind: input, shape index: {}]
  %s9 = inlined_call_operand.vmem [shape: f32[1,128], index: 9, kind: input, shape index: {}]
  %s10 = inlined_call_operand.hbm [shape: f32[2,8,128], index: 10, kind: output, shape index: {0}]
  %s11 = inlined_call_operand.hbm [shape: f32[2,128], index: 11, kind: output, shape index: {1}]
  %12 = xla_tuple %s10, %s11
  %s13 = sld [smem:[#allocation0]]
  $region82: #{tpu_custom_call.1} parent=0
    _
  %s15 = ssub.s32 1, %s13
  %s16 = scalar_select 0, %s15, %s13
  $region1: #{tpu_custom_call.1} parent=0
    #allocation3 [shape = 'u8[8192]{0}', space=vmem, size = 0x2000, scoped, tag = 'input window, operand 0, single buffered']
    #allocation4 [shape = 's32[1]{0}', space=sflag, size = 0x4, scoped, tag = 'scoped memory for tpu_custom_call.1']
    #allocation5 [shape = 's32[1]{0}', space=sflag, size = 0x4, scoped, tag = 'scoped memory for tpu_custom_call.1']
    #allocation6 [shape = 'u8[1024]{0}', space=vmem, size = 0x400, scoped, tag = 'input window, operand 1, single buffered']
    #allocation7 [shape = 's32[1]{0}', space=sflag, size = 0x4, scoped, tag = 'scoped memory for tpu_custom_call.1']
    #allocation8 [shape = 'u8[16384]{0}', space=vmem, size = 0x4000, scoped, tag = 'input window, operand 2, single buffered']
    #allocation9 [shape = 'u8[16384]{0}', space=vmem, size = 0x4000, scoped, tag = 'input window, operand 6, single buffered']
    #allocation10 [shape = 's32[1]{0}', space=sflag, size = 0x4, scoped, tag = 'scoped memory for tpu_custom_call.1']
    #allocation11 [shape = 'u8[16384]{0}', space=vmem, size = 0x4000, scoped, tag = 'input window, operand 8, single buffered']
    #allocation12 [shape = 'u8[8192]{0}', space=vmem, size = 0x2000, scoped, tag = 'output window, operand 0, single buffered']
    #allocation13 [shape = 'u8[1024]{0}', space=vmem, size = 0x400, scoped, tag = 'output window, operand 1, single buffered']
    #allocation14 [shape = 's32[1]{0}', space=sflag, size = 0x4, scoped, tag = 'scoped memory for tpu_custom_call.1']
    %17 = vsyncpa [#allocation4], 0
    %18 = vsyncpa [#allocation7], 0
    %19 = vsyncpa [#allocation10], 0
    %20 = vsyncpa [#allocation5], 0
    %21 = vsyncpa [#allocation14], 0
    // Predicated region
    $region2: #{tpu_custom_call.1} parent=1 // pred_check
      _
    $region3: #{tpu_custom_call.1} parent=1 // pred_check_branch
      %23 = sbr.rel (0) target = $region5
    $region4: #{tpu_custom_call.1} parent=1 // pred_region
      %s25 = ssub.s32 256, 256
      %26 = vsyncadd [#allocation4], %s25
      %s27 = sshll.u32 [#allocation3], 4
      %s28 = int_to_ptr.vmem [resolvable:$true] %s27
      %33 = dma.hbm_to_vmem [thread:$0]  %s0, 256, %s28, [#allocation4], 128, 128, 8
    $region5: #{tpu_custom_call.1} parent=1 // pred_fallthru
      _
    // Predicated region
    $region6: #{tpu_custom_call.1} parent=1 // pred_check
      _
    $region7: #{tpu_custom_call.1} parent=1 // pred_check_branch
      %35 = sbr.rel (0) target = $region9
    $region8: #{tpu_custom_call.1} parent=1 // pred_region
      %s37 = ssub.s32 32, 32
      %38 = vsyncadd [#allocation7], %s37
      %s40 = sshll.u32 [#allocation6], 4
      %s41 = int_to_ptr.vmem [resolvable:$true] %s40
      %43 = dma.hbm_to_vmem [thread:$0]  %s1, 32, %s41, [#allocation7]
    $region9: #{tpu_custom_call.1} parent=1 // pred_fallthru
      _
    // Predicated region
    $region10: #{tpu_custom_call.1} parent=1 // pred_check
      _
    $region11: #{tpu_custom_call.1} parent=1 // pred_check_branch
      %45 = sbr.rel (0) target = $region13
    $region12: #{tpu_custom_call.1} parent=1 // pred_region
      %s47 = ssub.s32 512, 512
      %48 = vsyncadd [#allocation7], %s47
      %s49 = sshll.u32 [#allocation8], 4
      %s50 = int_to_ptr.vmem [resolvable:$true] %s49
      %55 = dma.hbm_to_vmem [thread:$0]  %s2, 512, %s50, [#allocation7], 128, 128, 8
    $region13: #{tpu_custom_call.1} parent=1 // pred_fallthru
      _
    // Predicated region
    $region14: #{tpu_custom_call.1} parent=1 // pred_check
      _
    $region15: #{tpu_custom_call.1} parent=1 // pred_check_branch
      %57 = sbr.rel (0) target = $region17
    $region16: #{tpu_custom_call.1} parent=1 // pred_region
      _
    $region17: #{tpu_custom_call.1} parent=1 // pred_fallthru
      _
    // Predicated region
    $region18: #{tpu_custom_call.1} parent=1 // pred_check
      _
    $region19: #{tpu_custom_call.1} parent=1 // pred_check_branch
      %59 = sbr.rel (0) target = $region21
    $region20: #{tpu_custom_call.1} parent=1 // pred_region
      _
    $region21: #{tpu_custom_call.1} parent=1 // pred_fallthru
      _
    // Predicated region
    $region22: #{tpu_custom_call.1} parent=1 // pred_check
      _
    $region23: #{tpu_custom_call.1} parent=1 // pred_check_branch
      %61 = sbr.rel (0) target = $region25
    $region24: #{tpu_custom_call.1} parent=1 // pred_region
      _
    $region25: #{tpu_custom_call.1} parent=1 // pred_fallthru
      _
    // Predicated region
    $region26: #{tpu_custom_call.1} parent=1 // pred_check
      _
    $region27: #{tpu_custom_call.1} parent=1 // pred_check_branch
      %63 = sbr.rel (0) target = $region29
    $region28: #{tpu_custom_call.1} parent=1 // pred_region
      %s65 = ssub.s32 512, 512
      %66 = vsyncadd [#allocation10], %s65
      %s67 = sshll.u32 [#allocation9], 4
      %s68 = int_to_ptr.vmem [resolvable:$true] %s67
      %73 = dma.hbm_to_vmem [thread:$0]  %s6, 512, %s68, [#allocation10], 128, 128, 8
    $region29: #{tpu_custom_call.1} parent=1 // pred_fallthru
      _
    // Predicated region
    $region30: #{tpu_custom_call.1} parent=1 // pred_check
      _
    $region31: #{tpu_custom_call.1} parent=1 // pred_check_branch
      %75 = sbr.rel (0) target = $region33
    $region32: #{tpu_custom_call.1} parent=1 // pred_region
      _
    $region33: #{tpu_custom_call.1} parent=1 // pred_fallthru
      _
    // Predicated region
    $region34: #{tpu_custom_call.1} parent=1 // pred_check
      _
    $region35: #{tpu_custom_call.1} parent=1 // pred_check_branch
      %77 = sbr.rel (0) target = $region37
    $region36: #{tpu_custom_call.1} parent=1 // pred_region
      %s79 = ssub.s32 512, 512
      %80 = vsyncadd [#allocation10], %s79
      %s81 = sshll.u32 [#allocation11], 4
      %s82 = int_to_ptr.vmem [resolvable:$true] %s81
      %87 = dma.hbm_to_vmem [thread:$0]  %s8, 512, %s82, [#allocation10], 128, 128, 8
    $region37: #{tpu_custom_call.1} parent=1 // pred_fallthru
      _
    // Predicated region
    $region38: #{tpu_custom_call.1} parent=1 // pred_check
      _
    $region39: #{tpu_custom_call.1} parent=1 // pred_check_branch
      %89 = sbr.rel (0) target = $region41
    $region40: #{tpu_custom_call.1} parent=1 // pred_region
      _
    $region41: #{tpu_custom_call.1} parent=1 // pred_fallthru
      _
    // Predicated region
    $region42: #{tpu_custom_call.1} parent=1 // pred_check
      _
    $region43: #{tpu_custom_call.1} parent=1 // pred_check_branch
      %91 = sbr.rel (0) target = $region45
    $region44: #{tpu_custom_call.1} parent=1 // pred_region
      %92 = dma.done [#allocation4], 256
    $region45: #{tpu_custom_call.1} parent=1 // pred_fallthru
      _
    // Predicated region
    $region46: #{tpu_custom_call.1} parent=1 // pred_check
      _
    $region47: #{tpu_custom_call.1} parent=1 // pred_check_branch
      %94 = sbr.rel (0) target = $region49
    $region48: #{tpu_custom_call.1} parent=1 // pred_region
      %95 = dma.done [#allocation7], 32
    $region49: #{tpu_custom_call.1} parent=1 // pred_fallthru
      _
    // Predicated region
    $region50: #{tpu_custom_call.1} parent=1 // pred_check
      _
    $region51: #{tpu_custom_call.1} parent=1 // pred_check_branch
      %97 = sbr.rel (0) target = $region53
    $region52: #{tpu_custom_call.1} parent=1 // pred_region
      %98 = dma.done [#allocation7], 512
    $region53: #{tpu_custom_call.1} parent=1 // pred_fallthru
      _
    // Predicated region
    $region54: #{tpu_custom_call.1} parent=1 // pred_check
      _
    $region55: #{tpu_custom_call.1} parent=1 // pred_check_branch
      %100 = sbr.rel (0) target = $region57
    $region56: #{tpu_custom_call.1} parent=1 // pred_region
      %101 = dma.done [#allocation10], 512
    $region57: #{tpu_custom_call.1} parent=1 // pred_fallthru
      _
    // Predicated region
    $region58: #{tpu_custom_call.1} parent=1 // pred_check
      _
    $region59: #{tpu_custom_call.1} parent=1 // pred_check_branch
      %103 = sbr.rel (0) target = $region61
    $region60: #{tpu_custom_call.1} parent=1 // pred_region
      %104 = dma.done [#allocation10], 512
    $region61: #{tpu_custom_call.1} parent=1 // pred_fallthru
      _
    %p105 = scmp.eq.s32.totalorder 0, 0
    // Predicated region
    $region62: #{tpu_custom_call.1} parent=1 // pred_check
      %p106 = pneg %p105
    $region63: #{tpu_custom_call.1} parent=1 // pred_check_branch
      %108 = sbr.rel (%p106) target = $region65
    $region64: #{tpu_custom_call.1} parent=1 // pred_region
      %v109 = vld [vmem:[#allocation3] sm:$0xff]
      %v110 = vld [vmem:[#allocation3 + $0x8] sm:$0xff]
      %v111 = vld [vmem:[#allocation8] sm:$0xff]
      %v112 = vld [vmem:[#allocation8 + $0x8] sm:$0xff]
      %v113 = vld [vmem:[#allocation8 + $0x10] sm:$0xff]
      %v114 = vld [vmem:[#allocation8 + $0x18] sm:$0xff]
      %v115 = vld [vmem:[%s3] sm:$0x1]
      %v117 = vlaneseq
      %v118 = vshrl.u32 %v117, 7
      %v119 = vsub.s32 0, %v118
      %v120 = vrot.slane %v115, %v119
      %vm122 = vcmask 261120
      %v124 = vsel %vm122, %v109, 0
      %v127 = vsel %vm122, %v110, 0
      %129 = vmatprep.subr.mxu0 0.0
      %130 = vmatpush1.msra.mxu0 0.0
      %131 = vmatprep.subr.mxu0 0.0
      %132 = vmatpush1.msra.mxu0 0.0
      %133 = vmatprep.subr.mxu0 0.0
      %134 = vmatpush1.msra.mxu0 0.0
      %135 = vmatprep.subr.mxu0 0.0
      %136 = vmatpush1.msra.mxu0 0.0
      %137 = vmatprep.subr.mxu0 0.0
      %138 = vmatpush1.msra.mxu0 0.0
      %139 = vmatprep.subr.mxu0 0.0
      %140 = vmatpush1.msra.mxu0 0.0
      %141 = vmatprep.subr.mxu0 0.0
      %142 = vmatpush1.msra.mxu0 0.0
      %143 = vmatprep.subr.mxu0 0.0
      %144 = vmatpush1.msra.mxu0 0.0
      %145 = vmatprep.subr.mxu0 0.0
      %146 = vmatpush1.msra.mxu0 0.0
      %147 = vmatprep.subr.mxu0 0.0
      %148 = vmatpush1.msra.mxu0 0.0
      %149 = vmatprep.subr.mxu0 0.0
      %150 = vmatpush1.msra.mxu0 0.0
      %151 = vmatprep.subr.mxu0 0.0
      %152 = vmatpush1.msra.mxu0 0.0
      %153 = vmatprep.subr.mxu0 0.0
      %154 = vmatpush1.msra.mxu0 %v114
      %155 = vmatprep.subr.mxu0 0.0
      %156 = vmatpush1.msra.mxu0 %v113
      %157 = vmatprep.subr.mxu0 0.0
      %158 = vmatpush1.msra.mxu0 %v112
      %159 = vmatprep.subr.mxu0 0.0
      %160 = vmatpush1.msra.mxu0 %v111
      %161 = vmatprep.subr.mxu0 0.0
      %162 = vmatpush2.msra.mxu0 0.0
      %163 = vmatprep.subr.mxu0 0.0
      %164 = vmatpush2.msra.mxu0 0.0
      %165 = vmatprep.subr.mxu0 0.0
      %166 = vmatpush2.msra.mxu0 0.0
      %167 = vmatprep.subr.mxu0 0.0
      %168 = vmatpush2.msra.mxu0 0.0
      %169 = vmatprep.subr.mxu0 0.0
      %170 = vmatpush2.msra.mxu0 0.0
      %171 = vmatprep.subr.mxu0 0.0
      %172 = vmatpush2.msra.mxu0 0.0
      %173 = vmatprep.subr.mxu0 0.0
      %174 = vmatpush2.msra.mxu0 0.0
      %175 = vmatprep.subr.mxu0 0.0
      %176 = vmatpush2.msra.mxu0 0.0
      %177 = vmatprep.subr.mxu0 0.0
      %178 = vmatpush2.msra.mxu0 0.0
      %179 = vmatprep.subr.mxu0 0.0
      %180 = vmatpush2.msra.mxu0 0.0
      %181 = vmatprep.subr.mxu0 0.0
      %182 = vmatpush2.msra.mxu0 0.0
      %183 = vmatprep.subr.mxu0 0.0
      %184 = vmatpush2.msra.mxu0 0.0
      %185 = vmatprep.subr.mxu0 0.0
      %186 = vmatpush2.msra.mxu0 0.0
      %187 = vmatprep.subr.mxu0 0.0
      %188 = vmatpush2.msra.mxu0 0.0
      %189 = vmatprep.subr.mxu0 0.0
      %190 = vmatpush2.msra.mxu0 0.0
      %191 = vmatprep.subr.mxu0 0.0
      %192 = vmatpush2.msra.mxu0 0.0
      %193 = vmatprep.mubr.f32.mxu0 0.0
      %194 = vmatmul.mubr.f32.gmra.mxu0 %v124
      %v195 = vpop.f32.mrf.mxu0
      %v196 = vadd.f32 %v120, %v195
      %v197 = vpop.f32.mrf.mxu0
      %198 = vmatprep.mubr.f32.mxu0 0.0
      %199 = vmatmul.mubr.f32.gmra.mxu0 %v127
      %v200 = vpop.f32.mrf.mxu0
      %v201 = vadd.f32 %v120, %v200
      %v202 = vpop.f32.mrf.mxu0
      %203 = vdwg.mxu0
      %v204 = vmul.f32 %v196, 0.5
      %v205 = vmul.f32 %v201, 0.5
      %v206 = vmul.f32 %v196, 0.70710677
      %v207 = vmul.f32 %v201, 0.70710677
      %v208 = verf.f32.pop %v206
      %v209 = verf.f32.pop %v207
      %v210 = vadd.f32 %v208, 1.0
      %v211 = vadd.f32 %v209, 1.0
      %v212 = vmul.f32 %v204, %v210
      %v213 = vmul.f32 %v205, %v211
      %v214 = vsel %vm122, %v212, 0.0
      %215 = vadd.xlane.f32.xlu0 %v214
      %v216 = vpop.xlane.xlu0 %215
      %v217 = vsel %vm122, %v213, 0.0
      %218 = vadd.xlane.f32.xlu0 %v217
      %v219 = vpop.xlane.xlu0 %218
      %v220 = vrcp.pop 32.0
      %v221 = vmul.f32 %v216, %v220
      %v222 = vmul.f32 %v219, %v220
      %v223 = vsub.f32 %v212, %v221
      %v224 = vsub.f32 %v213, %v222
      %v225 = vmul.f32 %v223, %v223
      %v226 = vmul.f32 %v224, %v224
      %v227 = vsel %vm122, %v225, 0.0
      %228 = vadd.xlane.f32.xlu0 %v227
      %v229 = vpop.xlane.xlu0 %228
      %v230 = vsel %vm122, %v226, 0.0
      %231 = vadd.xlane.f32.xlu0 %v230
      %v232 = vpop.xlane.xlu0 %231
      %v233 = vmul.f32 %v229, %v220
      %v234 = vmul.f32 %v232, %v220
      %v235 = vadd.f32 %v233, 1e-12
      %v236 = vadd.f32 %v234, 1e-12
      %v237 = vrsqrt.pop %v235
      %v238 = vrsqrt.pop %v236
      %v239 = vmul.f32 %v223, %v237
      %v240 = vmul.f32 %v224, %v238
      %v241 = vld [vmem:[%s4] sm:$0x1]
      %v243 = vlaneseq
      %v244 = vshrl.u32 %v243, 7
      %v245 = vsub.s32 0, %v244
      %v246 = vrot.slane %v241, %v245
      %v248 = vmul.f32 %v239, %v246
      %v249 = vmul.f32 %v240, %v246
      %v250 = vld [vmem:[%s5] sm:$0x1]
      %v252 = vlaneseq
      %v253 = vshrl.u32 %v252, 7
      %v254 = vsub.s32 0, %v253
      %v255 = vrot.slane %v250, %v254
      %v257 = vadd.f32 %v248, %v255
      %v258 = vadd.f32 %v249, %v255
      %259 = vst.msk [vmem:[#allocation2] sm:$0xff] %vm122, %v257
      %260 = vst.msk [vmem:[#allocation2 + $0x8] sm:$0xff] %vm122, %v258
      %v261 = vld [vmem:[#allocation6] sm:$0x3]
      %v262 = vcvt.s32.f32 %v261
      %vm263 = vcmask 58368
      %v264 = vsel %vm263, %v262, 0.0
      %265 = vadd.xlane.f32.xlu0 %v264
      %v266 = vpop.xlane.xlu0 %265
      %v267 = vmax.f32 %v266, 1.0
      %v268 = vrcp.pop %v267
      %v269 = vmul.f32 1.0, %v268
      %v270 = vlaneseq
      %v271 = vshrl.u32 %v270, 7
      %v272 = vsub.s32 0, %v271
      %v273 = vrot.slane %v262, %v272
      %275 = vbcast.lane.b32.xlu0 %v273, 256
      %v276 = vpop.permute.xlu0 %275
      %v277 = vlaneseq
      %v278 = vshrl.u32 %v277, 7
      %v279 = vsub.s32 1, %v278
      %v280 = vrot.slane %v262, %v279
      %282 = vbcast.lane.b32.xlu0 %v280, 256
      %v283 = vpop.permute.xlu0 %282
      %v284 = vmul.f32 %v109, %v276
      %v285 = vmul.f32 %v110, %v283
      %v286 = vsel %vm122, %v284, 0.0
      %v287 = vrot.slane %v286, 4
      %v288 = vadd.f32 %v286, %v287
      %v289 = vrot.slane %v288, 2
      %v290 = vadd.f32 %v288, %v289
      %v291 = vrot.slane %v290, 1
      %v292 = vadd.f32 %v290, %v291
      %v293 = vsel %vm122, %v285, 0.0
      %v294 = vrot.slane %v293, 4
      %v295 = vadd.f32 %v293, %v294
      %v296 = vrot.slane %v295, 2
      %v297 = vadd.f32 %v295, %v296
      %v298 = vrot.slane %v297, 1
      %v299 = vadd.f32 %v297, %v298
      %v301 = vrot.slane %v269, 1
      %v304 = vmul.f32 %v292, %v269
      %v305 = vmul.f32 %v299, %v301
      %v306 = vld [vmem:[#allocation11] sm:$0xff]
      %v307 = vld [vmem:[#allocation11 + $0x8] sm:$0xff]
      %v308 = vld [vmem:[#allocation11 + $0x10] sm:$0xff]
      %v309 = vld [vmem:[#allocation11 + $0x18] sm:$0xff]
      %v310 = vld [vmem:[%s9] sm:$0x1]
      %v312 = vlaneseq
      %v313 = vshrl.u32 %v312, 7
      %v314 = vsub.s32 0, %v313
      %v315 = vrot.slane %v310, %v314
      %v319 = vrot.slane %v305, 7
      %vm320 = vcmask 1041409
      %v321 = vsel %vm320, %v319, %v304
      %v322 = vsel %vm122, %v321, 0
      %324 = vmatprep.subr.mxu0 0.0
      %325 = vmatpush1.msra.mxu0 0.0
      %326 = vmatprep.subr.mxu0 0.0
      %327 = vmatpush1.msra.mxu0 0.0
      %328 = vmatprep.subr.mxu0 0.0
      %329 = vmatpush1.msra.mxu0 0.0
      %330 = vmatprep.subr.mxu0 0.0
      %331 = vmatpush1.msra.mxu0 0.0
      %332 = vmatprep.subr.mxu0 0.0
      %333 = vmatpush1.msra.mxu0 0.0
      %334 = vmatprep.subr.mxu0 0.0
      %335 = vmatpush1.msra.mxu0 0.0
      %336 = vmatprep.subr.mxu0 0.0
      %337 = vmatpush1.msra.mxu0 0.0
      %338 = vmatprep.subr.mxu0 0.0
      %339 = vmatpush1.msra.mxu0 0.0
      %340 = vmatprep.subr.mxu0 0.0
      %341 = vmatpush1.msra.mxu0 0.0
      %342 = vmatprep.subr.mxu0 0.0
      %343 = vmatpush1.msra.mxu0 0.0
      %344 = vmatprep.subr.mxu0 0.0
      %345 = vmatpush1.msra.mxu0 0.0
      %346 = vmatprep.subr.mxu0 0.0
      %347 = vmatpush1.msra.mxu0 0.0
      %348 = vmatprep.subr.mxu0 0.0
      %349 = vmatpush1.msra.mxu0 %v309
      %350 = vmatprep.subr.mxu0 0.0
      %351 = vmatpush1.msra.mxu0 %v308
      %352 = vmatprep.subr.mxu0 0.0
      %353 = vmatpush1.msra.mxu0 %v307
      %354 = vmatprep.subr.mxu0 0.0
      %355 = vmatpush1.msra.mxu0 %v306
      %356 = vmatprep.subr.mxu0 0.0
      %357 = vmatpush2.msra.mxu0 0.0
      %358 = vmatprep.subr.mxu0 0.0
      %359 = vmatpush2.msra.mxu0 0.0
      %360 = vmatprep.subr.mxu0 0.0
      %361 = vmatpush2.msra.mxu0 0.0
      %362 = vmatprep.subr.mxu0 0.0
      %363 = vmatpush2.msra.mxu0 0.0
      %364 = vmatprep.subr.mxu0 0.0
      %365 = vmatpush2.msra.mxu0 0.0
      %366 = vmatprep.subr.mxu0 0.0
      %367 = vmatpush2.msra.mxu0 0.0
      %368 = vmatprep.subr.mxu0 0.0
      %369 = vmatpush2.msra.mxu0 0.0
      %370 = vmatprep.subr.mxu0 0.0
      %371 = vmatpush2.msra.mxu0 0.0
      %372 = vmatprep.subr.mxu0 0.0
      %373 = vmatpush2.msra.mxu0 0.0
      %374 = vmatprep.subr.mxu0 0.0
      %375 = vmatpush2.msra.mxu0 0.0
      %376 = vmatprep.subr.mxu0 0.0
      %377 = vmatpush2.msra.mxu0 0.0
      %378 = vmatprep.subr.mxu0 0.0
      %379 = vmatpush2.msra.mxu0 0.0
      %380 = vmatprep.subr.mxu0 0.0
      %381 = vmatpush2.msra.mxu0 0.0
      %382 = vmatprep.subr.mxu0 0.0
      %383 = vmatpush2.msra.mxu0 0.0
      %384 = vmatprep.subr.mxu0 0.0
      %385 = vmatpush2.msra.mxu0 0.0
      %386 = vmatprep.subr.mxu0 0.0
      %387 = vmatpush2.msra.mxu0 0.0
      %388 = vmatprep.mubr.f32.mxu0 0.0
      %389 = vmatmul.mubr.f32.gmra.mxu0 %v322
      %v390 = vpop.f32.mrf.mxu0
      %v391 = vadd.f32 %v315, %v390
      %v392 = vpop.f32.mrf.mxu0
      %393 = vdwg.mxu0
      %394 = vst [vmem:[#allocation13] sm:$0x3] %v391
    $region65: #{tpu_custom_call.1} parent=1 // pred_fallthru
      _
    %v395 = vld [vmem:[#allocation2] sm:$0xff]
    %v396 = vld [vmem:[#allocation2 + $0x8] sm:$0xff]
    %v397 = vld [vmem:[#allocation9] sm:$0xff]
    %v398 = vld [vmem:[#allocation9 + $0x8] sm:$0xff]
    %v399 = vld [vmem:[#allocation9 + $0x10] sm:$0xff]
    %v400 = vld [vmem:[#allocation9 + $0x18] sm:$0xff]
    %v401 = vld [vmem:[%s7] sm:$0x1]
    %v403 = vlaneseq
    %v404 = vshrl.u32 %v403, 7
    %v405 = vsub.s32 0, %v404
    %v406 = vrot.slane %v401, %v405
    %vm408 = vcmask 261120
    %v410 = vsel %vm408, %v395, 0
    %v413 = vsel %vm408, %v396, 0
    %415 = vmatprep.subr.mxu0 0.0
    %416 = vmatpush1.msra.mxu0 0.0
    %417 = vmatprep.subr.mxu0 0.0
    %418 = vmatpush1.msra.mxu0 0.0
    %419 = vmatprep.subr.mxu0 0.0
    %420 = vmatpush1.msra.mxu0 0.0
    %421 = vmatprep.subr.mxu0 0.0
    %422 = vmatpush1.msra.mxu0 0.0
    %423 = vmatprep.subr.mxu0 0.0
    %424 = vmatpush1.msra.mxu0 0.0
    %425 = vmatprep.subr.mxu0 0.0
    %426 = vmatpush1.msra.mxu0 0.0
    %427 = vmatprep.subr.mxu0 0.0
    %428 = vmatpush1.msra.mxu0 0.0
    %429 = vmatprep.subr.mxu0 0.0
    %430 = vmatpush1.msra.mxu0 0.0
    %431 = vmatprep.subr.mxu0 0.0
    %432 = vmatpush1.msra.mxu0 0.0
    %433 = vmatprep.subr.mxu0 0.0
    %434 = vmatpush1.msra.mxu0 0.0
    %435 = vmatprep.subr.mxu0 0.0
    %436 = vmatpush1.msra.mxu0 0.0
    %437 = vmatprep.subr.mxu0 0.0
    %438 = vmatpush1.msra.mxu0 0.0
    %439 = vmatprep.subr.mxu0 0.0
    %440 = vmatpush1.msra.mxu0 %v400
    %441 = vmatprep.subr.mxu0 0.0
    %442 = vmatpush1.msra.mxu0 %v399
    %443 = vmatprep.subr.mxu0 0.0
    %444 = vmatpush1.msra.mxu0 %v398
    %445 = vmatprep.subr.mxu0 0.0
    %446 = vmatpush1.msra.mxu0 %v397
    %447 = vmatprep.subr.mxu0 0.0
    %448 = vmatpush2.msra.mxu0 0.0
    %449 = vmatprep.subr.mxu0 0.0
    %450 = vmatpush2.msra.mxu0 0.0
    %451 = vmatprep.subr.mxu0 0.0
    %452 = vmatpush2.msra.mxu0 0.0
    %453 = vmatprep.subr.mxu0 0.0
    %454 = vmatpush2.msra.mxu0 0.0
    %455 = vmatprep.subr.mxu0 0.0
    %456 = vmatpush2.msra.mxu0 0.0
    %457 = vmatprep.subr.mxu0 0.0
    %458 = vmatpush2.msra.mxu0 0.0
    %459 = vmatprep.subr.mxu0 0.0
    %460 = vmatpush2.msra.mxu0 0.0
    %461 = vmatprep.subr.mxu0 0.0
    %462 = vmatpush2.msra.mxu0 0.0
    %463 = vmatprep.subr.mxu0 0.0
    %464 = vmatpush2.msra.mxu0 0.0
    %465 = vmatprep.subr.mxu0 0.0
    %466 = vmatpush2.msra.mxu0 0.0
    %467 = vmatprep.subr.mxu0 0.0
    %468 = vmatpush2.msra.mxu0 0.0
    %469 = vmatprep.subr.mxu0 0.0
    %470 = vmatpush2.msra.mxu0 0.0
    %471 = vmatprep.subr.mxu0 0.0
    %472 = vmatpush2.msra.mxu0 0.0
    %473 = vmatprep.subr.mxu0 0.0
    %474 = vmatpush2.msra.mxu0 0.0
    %475 = vmatprep.subr.mxu0 0.0
    %476 = vmatpush2.msra.mxu0 0.0
    %477 = vmatprep.subr.mxu0 0.0
    %478 = vmatpush2.msra.mxu0 0.0
    %479 = vmatprep.mubr.f32.mxu0 0.0
    %480 = vmatmul.mubr.f32.gmra.mxu0 %v410
    %v481 = vpop.f32.mrf.mxu0
    %v482 = vadd.f32 %v406, %v481
    %v483 = vpop.f32.mrf.mxu0
    %484 = vmatprep.mubr.f32.mxu0 0.0
    %485 = vmatmul.mubr.f32.gmra.mxu0 %v413
    %v486 = vpop.f32.mrf.mxu0
    %v487 = vadd.f32 %v406, %v486
    %v488 = vpop.f32.mrf.mxu0
    %489 = vdwg.mxu0
    %490 = vst [vmem:[#allocation12] sm:$0xff] %v482
    %491 = vst [vmem:[#allocation12 + $0x8] sm:$0xff] %v487
    // Predicated region
    $region66: #{tpu_custom_call.1} parent=1 // pred_check
      _
    $region67: #{tpu_custom_call.1} parent=1 // pred_check_branch
      %493 = sbr.rel (0) target = $region69
    $region68: #{tpu_custom_call.1} parent=1 // pred_region
      %s495 = ssub.s32 256, 256
      %496 = vsyncadd [#allocation5], %s495
      %s497 = sshll.u32 [#allocation12], 4
      %s498 = int_to_ptr.vmem [resolvable:$true] %s497
      %503 = dma.vmem_to_hbm [thread:$0]  %s498, 256, %s10, [#allocation5], 128, 128, 8
    $region69: #{tpu_custom_call.1} parent=1 // pred_fallthru
      _
    // Predicated region
    $region70: #{tpu_custom_call.1} parent=1 // pred_check
      _
    $region71: #{tpu_custom_call.1} parent=1 // pred_check_branch
      %505 = sbr.rel (0) target = $region73
    $region72: #{tpu_custom_call.1} parent=1 // pred_region
      %s507 = ssub.s32 32, 32
      %508 = vsyncadd [#allocation14], %s507
      %s510 = sshll.u32 [#allocation13], 4
      %s511 = int_to_ptr.vmem [resolvable:$true] %s510
      %513 = dma.vmem_to_hbm [thread:$0]  %s511, 32, %s11, [#allocation14]
    $region73: #{tpu_custom_call.1} parent=1 // pred_fallthru
      _
    // Predicated region
    $region74: #{tpu_custom_call.1} parent=1 // pred_check
      _
    $region75: #{tpu_custom_call.1} parent=1 // pred_check_branch
      %515 = sbr.rel (0) target = $region77
    $region76: #{tpu_custom_call.1} parent=1 // pred_region
      %516 = dma.done [#allocation5], 256
    $region77: #{tpu_custom_call.1} parent=1 // pred_fallthru
      _
    // Predicated region
    $region78: #{tpu_custom_call.1} parent=1 // pred_check
      _
    $region79: #{tpu_custom_call.1} parent=1 // pred_check_branch
      %518 = sbr.rel (0) target = $region81
    $region80: #{tpu_custom_call.1} parent=1 // pred_region
      %519 = dma.done [#allocation14], 32
    $region81: #{tpu_custom_call.1} parent=1 // pred_fallthru
      _
    %520 = vsyncpa [#allocation4], 1
    %521 = vsyncpa [#allocation7], 1
    %522 = vsyncpa [#allocation10], 1
    %523 = vsyncpa [#allocation5], 1
    %524 = vsyncpa [#allocation14], 1

</llo_original>
